<compile_context>
chip_gen: v7x
topology: tpu7x:2x2x1
jax: 0.10.0
libtpu: 0.0.40
codegen_flags: <defaults>
</compile_context>

<pallas_src>
import functools

import numpy as np
import jax
import jax.numpy as jnp
from jax.experimental import pallas as pl
from jax.experimental.pallas import tpu as pltpu

_LANES = 128


def _sh4_kernel(d_ref, o_ref, *, n_chunks, chunk):
    # d_ref: (3, ts, 128) f32 directions (x/y/z planes), lane- and sublane-dense.
    # o_ref: (16, ts, 128) SH degree-4 coefficients (bf16).
    odt = o_ref.dtype
    for c in range(n_chunks):
        sl = slice(c * chunk, (c + 1) * chunk)
        x = d_ref[0, sl, :]
        y = d_ref[1, sl, :]
        z = d_ref[2, sl, :]

        xy = x * y
        xz = x * z
        yz = y * z
        x2 = x * x
        y2 = y * y
        z2 = z * z

        # l = 0
        o_ref[0, sl, :] = jnp.full((chunk, _LANES), 0.28209479177387814, odt)
        # l = 1
        o_ref[1, sl, :] = (-0.48860251190291987 * y).astype(odt)
        o_ref[2, sl, :] = (0.48860251190291987 * z).astype(odt)
        o_ref[3, sl, :] = (-0.48860251190291987 * x).astype(odt)
        # l = 2
        o_ref[4, sl, :] = (1.0925484305920792 * xy).astype(odt)
        o_ref[5, sl, :] = (-1.0925484305920792 * yz).astype(odt)
        o_ref[6, sl, :] = (0.94617469575755997 * z2 - 0.31539156525251999).astype(odt)
        o_ref[7, sl, :] = (-1.0925484305920792 * xz).astype(odt)
        o_ref[8, sl, :] = (0.54627421529603959 * x2
                           - 0.54627421529603959 * y2).astype(odt)
        # l = 3
        o_ref[9, sl, :] = (0.59004358992664352 * y * (-3.0 * x2 + y2)).astype(odt)
        o_ref[10, sl, :] = (2.8906114426405538 * xy * z).astype(odt)
        o_ref[11, sl, :] = (0.45704579946446572 * y * (1.0 - 5.0 * z2)).astype(odt)
        o_ref[12, sl, :] = (0.3731763325901154 * z * (5.0 * z2 - 3.0)).astype(odt)
        o_ref[13, sl, :] = (0.45704579946446572 * x * (1.0 - 5.0 * z2)).astype(odt)
        o_ref[14, sl, :] = (1.4453057213202769 * z * (x2 - y2)).astype(odt)
        o_ref[15, sl, :] = (0.59004358992664352 * x * (-x2 + 3.0 * y2)).astype(odt)


def sh_directional_encoding(dirs: jax.Array, *, tile_n: int = 8192,
                            out_dtype=jnp.bfloat16) -> jax.Array:
    """SH (degree 4) directional encoding. dirs: (..., 3) -> (..., 16).

    tile_n = points per grid step (8192 default). VMEM per step (double-buffered)
    at 8192 pts is ~0.7 MiB, far under every generation's scoped VMEM default.
    With N >= 16K points the grid has >= 2 steps, so v7x megacore still shards.
    """
    assert dirs.shape[-1] == 3, "last dim must be 3"
    batch_shape = dirs.shape[:-1]
    n = int(np.prod(batch_shape)) if batch_shape else 1

    d = dirs.astype(jnp.float32).reshape(n, 3)

    # Rows of 128 points (lane axis); ts = sublane-rows per grid step.
    n128 = pl.cdiv(n, _LANES)
    ts = max(tile_n // _LANES, 1)
    if ts >= n128:
        ts = n128                      # single block: block dim == full dim is legal
    else:
        ts = max((ts // 8) * 8, 8)     # multi-block: sublane dim must be mult. of 8
    n128_pad = pl.cdiv(n128, ts) * ts
    n_pad = n128_pad * _LANES

    # Pad + transpose folded into one expression (single fused pass); reshape to
    # the dense (3, rows, 128) layout is a free contiguous reshape.
    d_t = jnp.pad(d.T, ((0, 0), (0, n_pad - n))).reshape(3, n128_pad, _LANES)

    # In-kernel chunking: 16 sublane rows (2048 points) per chunk -> full bf16
    # tiles per row store and bounded vreg pressure.
    if ts % 16 == 0:
        chunk, n_chunks = 16, ts // 16
    else:
        chunk, n_chunks = ts, 1

    grid = (n128_pad // ts,)
    out3 = pl.pallas_call(
        functools.partial(_sh4_kernel, n_chunks=n_chunks, chunk=chunk),
        out_shape=jax.ShapeDtypeStruct((16, n128_pad, _LANES), out_dtype),
        grid=grid,
        in_specs=[pl.BlockSpec((3, ts, _LANES), lambda i: (0, i, 0))],
        out_specs=pl.BlockSpec((16, ts, _LANES), lambda i: (0, i, 0)),
        compiler_params=pltpu.CompilerParams(
            dimension_semantics=("parallel",)),
    )(d_t)

    # TODO(synk): keep the (16, N) feature-major slab and fuse into the first
    # downstream matmul to avoid this (bf16) slice+transpose pass.
    out = out3.reshape(16, n_pad)[:, :n].T  # (n, 16)
    return out.reshape(*batch_shape, 16)


def _sh4_reference(dirs: jax.Array) -> jax.Array:
    """Pure-JAX f32 reference of the same math (tcnn degree-4 formulas)."""
    v = ((dirs.astype(jnp.float32) + 1.0) * 0.5) * 2.0 - 1.0
    x, y, z = v[..., 0], v[..., 1], v[..., 2]
    xy, xz, yz = x * y, x * z, y * z
    x2, y2, z2 = x * x, y * y, z * z
    return jnp.stack([
        jnp.full_like(x, 0.28209479177387814),
        -0.48860251190291987 * y,
        0.48860251190291987 * z,
        -0.48860251190291987 * x,
        1.0925484305920792 * xy,
        -1.0925484305920792 * yz,
        0.94617469575755997 * z2 - 0.31539156525251999,
        -1.0925484305920792 * xz,
        0.54627421529603959 * x2 - 0.54627421529603959 * y2,
        0.59004358992664352 * y * (-3.0 * x2 + y2),
        2.8906114426405538 * xy * z,
        0.45704579946446572 * y * (1.0 - 5.0 * z2),
        0.3731763325901154 * z * (5.0 * z2 - 3.0),
        0.45704579946446572 * x * (1.0 - 5.0 * z2),
        1.4453057213202769 * z * (x2 - y2),
        0.59004358992664352 * x * (-x2 + 3.0 * y2),
    ], axis=-1)


if __name__ == "__main__":
    key = jax.random.PRNGKey(0)
    # Small batch of directions: (batch=2, rays=100, 3), unit-normalized.
    raw = jax.random.normal(key, (2, 100, 3), dtype=jnp.float32)
    dirs = raw / jnp.linalg.norm(raw, axis=-1, keepdims=True)

    out = sh_directional_encoding(dirs)
    out = jax.block_until_ready(out)

    ref = _sh4_reference(dirs)
    assert out.shape == (2, 100, 16), out.shape
    # bf16 output (tcnn's native encodings emit half precision) -> half-precision tol.
    np.testing.assert_allclose(np.asarray(out, dtype=np.float32), np.asarray(ref),
                               rtol=1e-2, atol=1e-2)

    print("KERNEL_OK")
</pallas_src>

<mosaic_0001>
module attributes {stable_mosaic.version = 11 : i64} {
  func.func @_sh4_kernel(%arg0: i32, %arg1: memref<3x2x128xf32, #tpu.memory_space<vmem>>, %arg2: memref<16x2x128xbf16, #tpu.memory_space<vmem>>) attributes {dimension_semantics = [#tpu.dimension_semantics<parallel>], iteration_bounds = array<i64: 1>, scalar_prefetch = 0 : i64, scratch_operands = 0 : i64, tpu.core_type = #tpu.core_type<tc>, window_params = [{transform_indices = @transform_0, window_bounds = array<i64: 3, 2, 128>}, {transform_indices = @transform_1, window_bounds = array<i64: 16, 2, 128>}]} {
    %c0 = arith.constant 0 : index
    %c0_0 = arith.constant 0 : index
    %c0_1 = arith.constant 0 : index
    %0 = vector.load %arg1[%c0, %c0_0, %c0_1] : memref<3x2x128xf32, #tpu.memory_space<vmem>>, vector<1x2x128xf32>
    %1 = vector.shape_cast %0 : vector<1x2x128xf32> to vector<2x128xf32>
    %c1 = arith.constant 1 : index
    %c0_2 = arith.constant 0 : index
    %c0_3 = arith.constant 0 : index
    %2 = vector.load %arg1[%c1, %c0_2, %c0_3] : memref<3x2x128xf32, #tpu.memory_space<vmem>>, vector<1x2x128xf32>
    %3 = vector.shape_cast %2 : vector<1x2x128xf32> to vector<2x128xf32>
    %c2 = arith.constant 2 : index
    %c0_4 = arith.constant 0 : index
    %c0_5 = arith.constant 0 : index
    %4 = vector.load %arg1[%c2, %c0_4, %c0_5] : memref<3x2x128xf32, #tpu.memory_space<vmem>>, vector<1x2x128xf32>
    %5 = vector.shape_cast %4 : vector<1x2x128xf32> to vector<2x128xf32>
    %6 = arith.mulf %1, %3 : vector<2x128xf32>
    %7 = arith.mulf %1, %5 : vector<2x128xf32>
    %8 = arith.mulf %3, %5 : vector<2x128xf32>
    %9 = arith.mulf %1, %1 : vector<2x128xf32>
    %10 = arith.mulf %3, %3 : vector<2x128xf32>
    %11 = arith.mulf %5, %5 : vector<2x128xf32>
    %cst = arith.constant 2.812500e-01 : bf16
    %12 = vector.broadcast %cst : bf16 to vector<2x128xbf16>
    %c0_6 = arith.constant 0 : index
    %c0_7 = arith.constant 0 : index
    %c0_8 = arith.constant 0 : index
    %13 = vector.load %arg2[%c0_6, %c0_7, %c0_8] : memref<16x2x128xbf16, #tpu.memory_space<vmem>>, vector<1x2x128xbf16>
    %14 = vector.shape_cast %13 : vector<1x2x128xbf16> to vector<2x128xbf16>
    %15 = vector.shape_cast %12 : vector<2x128xbf16> to vector<1x2x128xbf16>
    tpu.vector_store %arg2[%c0_6, %c0_7, %c0_8], %15 {strides = array<i32>} : memref<16x2x128xbf16, #tpu.memory_space<vmem>>, vector<1x2x128xbf16>,
    %cst_9 = arith.constant -0.488602519 : f32
    %16 = vector.broadcast %cst_9 : f32 to vector<2x128xf32>
    %17 = arith.mulf %16, %3 : vector<2x128xf32>
    %18 = arith.truncf %17 : vector<2x128xf32> to vector<2x128xbf16>
    %c1_10 = arith.constant 1 : index
    %c0_11 = arith.constant 0 : index
    %c0_12 = arith.constant 0 : index
    %19 = vector.load %arg2[%c1_10, %c0_11, %c0_12] : memref<16x2x128xbf16, #tpu.memory_space<vmem>>, vector<1x2x128xbf16>
    %20 = vector.shape_cast %19 : vector<1x2x128xbf16> to vector<2x128xbf16>
    %21 = vector.shape_cast %18 : vector<2x128xbf16> to vector<1x2x128xbf16>
    tpu.vector_store %arg2[%c1_10, %c0_11, %c0_12], %21 {strides = array<i32>} : memref<16x2x128xbf16, #tpu.memory_space<vmem>>, vector<1x2x128xbf16>,
    %cst_13 = arith.constant 0.488602519 : f32
    %22 = vector.broadcast %cst_13 : f32 to vector<2x128xf32>
    %23 = arith.mulf %22, %5 : vector<2x128xf32>
    %24 = arith.truncf %23 : vector<2x128xf32> to vector<2x128xbf16>
    %c2_14 = arith.constant 2 : index
    %c0_15 = arith.constant 0 : index
    %c0_16 = arith.constant 0 : index
    %25 = vector.load %arg2[%c2_14, %c0_15, %c0_16] : memref<16x2x128xbf16, #tpu.memory_space<vmem>>, vector<1x2x128xbf16>
    %26 = vector.shape_cast %25 : vector<1x2x128xbf16> to vector<2x128xbf16>
    %27 = vector.shape_cast %24 : vector<2x128xbf16> to vector<1x2x128xbf16>
    tpu.vector_store %arg2[%c2_14, %c0_15, %c0_16], %27 {strides = array<i32>} : memref<16x2x128xbf16, #tpu.memory_space<vmem>>, vector<1x2x128xbf16>,
    %cst_17 = arith.constant -0.488602519 : f32
    %28 = vector.broadcast %cst_17 : f32 to vector<2x128xf32>
    %29 = arith.mulf %28, %1 : vector<2x128xf32>
    %30 = arith.truncf %29 : vector<2x128xf32> to vector<2x128xbf16>
    %c3 = arith.constant 3 : index
    %c0_18 = arith.constant 0 : index
    %c0_19 = arith.constant 0 : index
    %31 = vector.load %arg2[%c3, %c0_18, %c0_19] : memref<16x2x128xbf16, #tpu.memory_space<vmem>>, vector<1x2x128xbf16>
    %32 = vector.shape_cast %31 : vector<1x2x128xbf16> to vector<2x128xbf16>
    %33 = vector.shape_cast %30 : vector<2x128xbf16> to vector<1x2x128xbf16>
    tpu.vector_store %arg2[%c3, %c0_18, %c0_19], %33 {strides = array<i32>} : memref<16x2x128xbf16, #tpu.memory_space<vmem>>, vector<1x2x128xbf16>,
    %cst_20 = arith.constant 1.09254849 : f32
    %34 = vector.broadcast %cst_20 : f32 to vector<2x128xf32>
    %35 = arith.mulf %34, %6 : vector<2x128xf32>
    %36 = arith.truncf %35 : vector<2x128xf32> to vector<2x128xbf16>
    %c4 = arith.constant 4 : index
    %c0_21 = arith.constant 0 : index
    %c0_22 = arith.constant 0 : index
    %37 = vector.load %arg2[%c4, %c0_21, %c0_22] : memref<16x2x128xbf16, #tpu.memory_space<vmem>>, vector<1x2x128xbf16>
    %38 = vector.shape_cast %37 : vector<1x2x128xbf16> to vector<2x128xbf16>
    %39 = vector.shape_cast %36 : vector<2x128xbf16> to vector<1x2x128xbf16>
    tpu.vector_store %arg2[%c4, %c0_21, %c0_22], %39 {strides = array<i32>} : memref<16x2x128xbf16, #tpu.memory_space<vmem>>, vector<1x2x128xbf16>,
    %cst_23 = arith.constant -1.09254849 : f32
    %40 = vector.broadcast %cst_23 : f32 to vector<2x128xf32>
    %41 = arith.mulf %40, %8 : vector<2x128xf32>
    %42 = arith.truncf %41 : vector<2x128xf32> to vector<2x128xbf16>
    %c5 = arith.constant 5 : index
    %c0_24 = arith.constant 0 : index
    %c0_25 = arith.constant 0 : index
    %43 = vector.load %arg2[%c5, %c0_24, %c0_25] : memref<16x2x128xbf16, #tpu.memory_space<vmem>>, vector<1x2x128xbf16>
    %44 = vector.shape_cast %43 : vector<1x2x128xbf16> to vector<2x128xbf16>
    %45 = vector.shape_cast %42 : vector<2x128xbf16> to vector<1x2x128xbf16>
    tpu.vector_store %arg2[%c5, %c0_24, %c0_25], %45 {strides = array<i32>} : memref<16x2x128xbf16, #tpu.memory_space<vmem>>, vector<1x2x128xbf16>,
    %cst_26 = arith.constant 0.946174681 : f32
    %46 = vector.broadcast %cst_26 : f32 to vector<2x128xf32>
    %47 = arith.mulf %46, %11 : vector<2x128xf32>
    %cst_27 = arith.constant 0.31539157 : f32
    %48 = vector.broadcast %cst_27 : f32 to vector<2x128xf32>
    %49 = arith.subf %47, %48 : vector<2x128xf32>
    %50 = arith.truncf %49 : vector<2x128xf32> to vector<2x128xbf16>
    %c6 = arith.constant 6 : index
    %c0_28 = arith.constant 0 : index
    %c0_29 = arith.constant 0 : index
    %51 = vector.load %arg2[%c6, %c0_28, %c0_29] : memref<16x2x128xbf16, #tpu.memory_space<vmem>>, vector<1x2x128xbf16>
    %52 = vector.shape_cast %51 : vector<1x2x128xbf16> to vector<2x128xbf16>
    %53 = vector.shape_cast %50 : vector<2x128xbf16> to vector<1x2x128xbf16>
    tpu.vector_store %arg2[%c6, %c0_28, %c0_29], %53 {strides = array<i32>} : memref<16x2x128xbf16, #tpu.memory_space<vmem>>, vector<1x2x128xbf16>,
    %cst_30 = arith.constant -1.09254849 : f32
    %54 = vector.broadcast %cst_30 : f32 to vector<2x128xf32>
    %55 = arith.mulf %54, %7 : vector<2x128xf32>
    %56 = arith.truncf %55 : vector<2x128xf32> to vector<2x128xbf16>
    %c7 = arith.constant 7 : index
    %c0_31 = arith.constant 0 : index
    %c0_32 = arith.constant 0 : index
    %57 = vector.load %arg2[%c7, %c0_31, %c0_32] : memref<16x2x128xbf16, #tpu.memory_space<vmem>>, vector<1x2x128xbf16>
    %58 = vector.shape_cast %57 : vector<1x2x128xbf16> to vector<2x128xbf16>
    %59 = vector.shape_cast %56 : vector<2x128xbf16> to vector<1x2x128xbf16>
    tpu.vector_store %arg2[%c7, %c0_31, %c0_32], %59 {strides = array<i32>} : memref<16x2x128xbf16, #tpu.memory_space<vmem>>, vector<1x2x128xbf16>,
    %cst_33 = arith.constant 0.546274245 : f32
    %60 = vector.broadcast %cst_33 : f32 to vector<2x128xf32>
    %61 = arith.mulf %60, %9 : vector<2x128xf32>
    %cst_34 = arith.constant 0.546274245 : f32
    %62 = vector.broadcast %cst_34 : f32 to vector<2x128xf32>
    %63 = arith.mulf %62, %10 : vector<2x128xf32>
    %64 = arith.subf %61, %63 : vector<2x128xf32>
    %65 = arith.truncf %64 : vector<2x128xf32> to vector<2x128xbf16>
    %c8 = arith.constant 8 : index
    %c0_35 = arith.constant 0 : index
    %c0_36 = arith.constant 0 : index
    %66 = vector.load %arg2[%c8, %c0_35, %c0_36] : memref<16x2x128xbf16, #tpu.memory_space<vmem>>, vector<1x2x128xbf16>
    %67 = vector.shape_cast %66 : vector<1x2x128xbf16> to vector<2x128xbf16>
    %68 = vector.shape_cast %65 : vector<2x128xbf16> to vector<1x2x128xbf16>
    tpu.vector_store %arg2[%c8, %c0_35, %c0_36], %68 {strides = array<i32>} : memref<16x2x128xbf16, #tpu.memory_space<vmem>>, vector<1x2x128xbf16>,
    %cst_37 = arith.constant 0.590043604 : f32
    %69 = vector.broadcast %cst_37 : f32 to vector<2x128xf32>
    %70 = arith.mulf %69, %3 : vector<2x128xf32>
    %cst_38 = arith.constant -3.000000e+00 : f32
    %71 = vector.broadcast %cst_38 : f32 to vector<2x128xf32>
    %72 = arith.mulf %71, %9 : vector<2x128xf32>
    %73 = arith.addf %72, %10 : vector<2x128xf32>
    %74 = arith.mulf %70, %73 : vector<2x128xf32>
    %75 = arith.truncf %74 : vector<2x128xf32> to vector<2x128xbf16>
    %c9 = arith.constant 9 : index
    %c0_39 = arith.constant 0 : index
    %c0_40 = arith.constant 0 : index
    %76 = vector.load %arg2[%c9, %c0_39, %c0_40] : memref<16x2x128xbf16, #tpu.memory_space<vmem>>, vector<1x2x128xbf16>
    %77 = vector.shape_cast %76 : vector<1x2x128xbf16> to vector<2x128xbf16>
    %78 = vector.shape_cast %75 : vector<2x128xbf16> to vector<1x2x128xbf16>
    tpu.vector_store %arg2[%c9, %c0_39, %c0_40], %78 {strides = array<i32>} : memref<16x2x128xbf16, #tpu.memory_space<vmem>>, vector<1x2x128xbf16>,
    %cst_41 = arith.constant 2.89061141 : f32
    %79 = vector.broadcast %cst_41 : f32 to vector<2x128xf32>
    %80 = arith.mulf %79, %6 : vector<2x128xf32>
    %81 = arith.mulf %80, %5 : vector<2x128xf32>
    %82 = arith.truncf %81 : vector<2x128xf32> to vector<2x128xbf16>
    %c10 = arith.constant 10 : index
    %c0_42 = arith.constant 0 : index
    %c0_43 = arith.constant 0 : index
    %83 = vector.load %arg2[%c10, %c0_42, %c0_43] : memref<16x2x128xbf16, #tpu.memory_space<vmem>>, vector<1x2x128xbf16>
    %84 = vector.shape_cast %83 : vector<1x2x128xbf16> to vector<2x128xbf16>
    %85 = vector.shape_cast %82 : vector<2x128xbf16> to vector<1x2x128xbf16>
    tpu.vector_store %arg2[%c10, %c0_42, %c0_43], %85 {strides = array<i32>} : memref<16x2x128xbf16, #tpu.memory_space<vmem>>, vector<1x2x128xbf16>,
    %cst_44 = arith.constant 0.457045794 : f32
    %86 = vector.broadcast %cst_44 : f32 to vector<2x128xf32>
    %87 = arith.mulf %86, %3 : vector<2x128xf32>
    %cst_45 = arith.constant 5.000000e+00 : f32
    %88 = vector.broadcast %cst_45 : f32 to vector<2x128xf32>
    %89 = arith.mulf %88, %11 : vector<2x128xf32>
    %cst_46 = arith.constant 1.000000e+00 : f32
    %90 = vector.broadcast %cst_46 : f32 to vector<2x128xf32>
    %91 = arith.subf %90, %89 : vector<2x128xf32>
    %92 = arith.mulf %87, %91 : vector<2x128xf32>
    %93 = arith.truncf %92 : vector<2x128xf32> to vector<2x128xbf16>
    %c11 = arith.constant 11 : index
    %c0_47 = arith.constant 0 : index
    %c0_48 = arith.constant 0 : index
    %94 = vector.load %arg2[%c11, %c0_47, %c0_48] : memref<16x2x128xbf16, #tpu.memory_space<vmem>>, vector<1x2x128xbf16>
    %95 = vector.shape_cast %94 : vector<1x2x128xbf16> to vector<2x128xbf16>
    %96 = vector.shape_cast %93 : vector<2x128xbf16> to vector<1x2x128xbf16>
    tpu.vector_store %arg2[%c11, %c0_47, %c0_48], %96 {strides = array<i32>} : memref<16x2x128xbf16, #tpu.memory_space<vmem>>, vector<1x2x128xbf16>,
    %cst_49 = arith.constant 0.373176336 : f32
    %97 = vector.broadcast %cst_49 : f32 to vector<2x128xf32>
    %98 = arith.mulf %97, %5 : vector<2x128xf32>
    %cst_50 = arith.constant 5.000000e+00 : f32
    %99 = vector.broadcast %cst_50 : f32 to vector<2x128xf32>
    %100 = arith.mulf %99, %11 : vector<2x128xf32>
    %cst_51 = arith.constant 3.000000e+00 : f32
    %101 = vector.broadcast %cst_51 : f32 to vector<2x128xf32>
    %102 = arith.subf %100, %101 : vector<2x128xf32>
    %103 = arith.mulf %98, %102 : vector<2x128xf32>
    %104 = arith.truncf %103 : vector<2x128xf32> to vector<2x128xbf16>
    %c12 = arith.constant 12 : index
    %c0_52 = arith.constant 0 : index
    %c0_53 = arith.constant 0 : index
    %105 = vector.load %arg2[%c12, %c0_52, %c0_53] : memref<16x2x128xbf16, #tpu.memory_space<vmem>>, vector<1x2x128xbf16>
    %106 = vector.shape_cast %105 : vector<1x2x128xbf16> to vector<2x128xbf16>
    %107 = vector.shape_cast %104 : vector<2x128xbf16> to vector<1x2x128xbf16>
    tpu.vector_store %arg2[%c12, %c0_52, %c0_53], %107 {strides = array<i32>} : memref<16x2x128xbf16, #tpu.memory_space<vmem>>, vector<1x2x128xbf16>,
    %cst_54 = arith.constant 0.457045794 : f32
    %108 = vector.broadcast %cst_54 : f32 to vector<2x128xf32>
    %109 = arith.mulf %108, %1 : vector<2x128xf32>
    %cst_55 = arith.constant 5.000000e+00 : f32
    %110 = vector.broadcast %cst_55 : f32 to vector<2x128xf32>
    %111 = arith.mulf %110, %11 : vector<2x128xf32>
    %cst_56 = arith.constant 1.000000e+00 : f32
    %112 = vector.broadcast %cst_56 : f32 to vector<2x128xf32>
    %113 = arith.subf %112, %111 : vector<2x128xf32>
    %114 = arith.mulf %109, %113 : vector<2x128xf32>
    %115 = arith.truncf %114 : vector<2x128xf32> to vector<2x128xbf16>
    %c13 = arith.constant 13 : index
    %c0_57 = arith.constant 0 : index
    %c0_58 = arith.constant 0 : index
    %116 = vector.load %arg2[%c13, %c0_57, %c0_58] : memref<16x2x128xbf16, #tpu.memory_space<vmem>>, vector<1x2x128xbf16>
    %117 = vector.shape_cast %116 : vector<1x2x128xbf16> to vector<2x128xbf16>
    %118 = vector.shape_cast %115 : vector<2x128xbf16> to vector<1x2x128xbf16>
    tpu.vector_store %arg2[%c13, %c0_57, %c0_58], %118 {strides = array<i32>} : memref<16x2x128xbf16, #tpu.memory_space<vmem>>, vector<1x2x128xbf16>,
    %cst_59 = arith.constant 1.44530571 : f32
    %119 = vector.broadcast %cst_59 : f32 to vector<2x128xf32>
    %120 = arith.mulf %119, %5 : vector<2x128xf32>
    %121 = arith.subf %9, %10 : vector<2x128xf32>
    %122 = arith.mulf %120, %121 : vector<2x128xf32>
    %123 = arith.truncf %122 : vector<2x128xf32> to vector<2x128xbf16>
    %c14 = arith.constant 14 : index
    %c0_60 = arith.constant 0 : index
    %c0_61 = arith.constant 0 : index
    %124 = vector.load %arg2[%c14, %c0_60, %c0_61] : memref<16x2x128xbf16, #tpu.memory_space<vmem>>, vector<1x2x128xbf16>
    %125 = vector.shape_cast %124 : vector<1x2x128xbf16> to vector<2x128xbf16>
    %126 = vector.shape_cast %123 : vector<2x128xbf16> to vector<1x2x128xbf16>
    tpu.vector_store %arg2[%c14, %c0_60, %c0_61], %126 {strides = array<i32>} : memref<16x2x128xbf16, #tpu.memory_space<vmem>>, vector<1x2x128xbf16>,
    %cst_62 = arith.constant 0.590043604 : f32
    %127 = vector.broadcast %cst_62 : f32 to vector<2x128xf32>
    %128 = arith.mulf %127, %1 : vector<2x128xf32>
    %cst_63 = arith.constant 0.000000e+00 : f32
    %129 = vector.broadcast %cst_63 : f32 to vector<2x128xf32>
    %130 = arith.subf %129, %9 : vector<2x128xf32>
    %cst_64 = arith.constant 3.000000e+00 : f32
    %131 = vector.broadcast %cst_64 : f32 to vector<2x128xf32>
    %132 = arith.mulf %131, %10 : vector<2x128xf32>
    %133 = arith.addf %130, %132 : vector<2x128xf32>
    %134 = arith.mulf %128, %133 : vector<2x128xf32>
    %135 = arith.truncf %134 : vector<2x128xf32> to vector<2x128xbf16>
    %c15 = arith.constant 15 : index
    %c0_65 = arith.constant 0 : index
    %c0_66 = arith.constant 0 : index
    %136 = vector.load %arg2[%c15, %c0_65, %c0_66] : memref<16x2x128xbf16, #tpu.memory_space<vmem>>, vector<1x2x128xbf16>
    %137 = vector.shape_cast %136 : vector<1x2x128xbf16> to vector<2x128xbf16>
    %138 = vector.shape_cast %135 : vector<2x128xbf16> to vector<1x2x128xbf16>
    tpu.vector_store %arg2[%c15, %c0_65, %c0_66], %138 {strides = array<i32>} : memref<16x2x128xbf16, #tpu.memory_space<vmem>>, vector<1x2x128xbf16>,
    return
  }
  func.func @transform_0(%arg0: i32) -> (i32, i32, i32) {
    %c0_i32 = arith.constant 0 : i32
    %c0_i32_0 = arith.constant 0 : i32
    %c0_i32_1 = arith.constant 0 : i32
    return %c0_i32, %arg0, %c0_i32_0 : i32, i32, i32
  }
  func.func @transform_1(%arg0: i32) -> (i32, i32, i32) {
    %c0_i32 = arith.constant 0 : i32
    %c0_i32_0 = arith.constant 0 : i32
    %c0_i32_1 = arith.constant 0 : i32
    return %c0_i32, %arg0, %c0_i32_0 : i32, i32, i32
  }
}

</mosaic_0001>

<llo_original>
// kernel: tpu_custom_call.1
$region0: #{tpu_custom_call.1}
  #allocation0 [shape = 'u32[]', space=smem, size = 0x4, offset = 0x4, fixed_abs, tag = 'smem constant byte address 0x4 - core index']
  #allocation1 [shape = 'u32[144,128]{1,0:T(1,128)}', space=vmem, size = 0x12000, scoped, tag = 'internal scratch']
  %s0 = inlined_call_operand.hbm [shape: f32[3,2,128], index: 0, kind: input, shape index: {}]
  %s1 = inlined_call_operand.hbm [shape: bf16[16,2,128], index: 1, kind: output, shape index: {}]
  %s2 = sld [smem:[#allocation0]]
  $region18: #{tpu_custom_call.1} parent=0
    _
  %s4 = ssub.s32 1, %s2
  %s5 = scalar_select 0, %s4, %s2
  $region1: #{tpu_custom_call.1} parent=0
    #allocation2 [shape = 'u8[3072]{0}', space=vmem, size = 0xc00, scoped, tag = 'input window, operand 0, single buffered']
    #allocation3 [shape = 's32[1]{0}', space=sflag, size = 0x4, scoped, tag = 'scoped memory for tpu_custom_call.1']
    #allocation4 [shape = 's32[1]{0}', space=sflag, size = 0x4, scoped, tag = 'scoped memory for tpu_custom_call.1']
    #allocation5 [shape = 'u8[8192]{0}', space=vmem, size = 0x2000, scoped, tag = 'output window, operand 0, single buffered']
    %6 = vsyncpa [#allocation3], 0
    %7 = vsyncpa [#allocation4], 0
    // Predicated region
    $region2: #{tpu_custom_call.1} parent=1 // pred_check
      _
    $region3: #{tpu_custom_call.1} parent=1 // pred_check_branch
      %9 = sbr.rel (0) target = $region5
    $region4: #{tpu_custom_call.1} parent=1 // pred_region
      %s11 = ssub.s32 96, 96
      %12 = vsyncadd [#allocation3], %s11
      %s13 = sshll.u32 [#allocation2], 4
      %s14 = int_to_ptr.vmem [resolvable:$true] %s13
      %19 = dma.hbm_to_vmem [thread:$0]  %s0, 96, %s14, [#allocation3], 32, 32, 2
    $region5: #{tpu_custom_call.1} parent=1 // pred_fallthru
      _
    // Predicated region
    $region6: #{tpu_custom_call.1} parent=1 // pred_check
      _
    $region7: #{tpu_custom_call.1} parent=1 // pred_check_branch
      %21 = sbr.rel (0) target = $region9
    $region8: #{tpu_custom_call.1} parent=1 // pred_region
      %22 = dma.done [#allocation3], 96
    $region9: #{tpu_custom_call.1} parent=1 // pred_fallthru
      _
    %v24 = vld [vmem:[#allocation2] sm:$0x3]
    %s25 = scalar_lea.vmem [#allocation2], 2
    %v26 = vld [vmem:[%s25] sm:$0x3]
    %s27 = scalar_lea.vmem [#allocation2], 4
    %v28 = vld [vmem:[%s27] sm:$0x3]
    %v29 = vmul.f32 %v24, %v26
    %v30 = vmul.f32 %v24, %v28
    %v31 = vmul.f32 %v26, %v28
    %v32 = vmul.f32 %v24, %v24
    %v33 = vmul.f32 %v26, %v26
    %v34 = vmul.f32 %v28, %v28
    %35 = vst [vmem:[#allocation5] sm:$0x1] 1049640592
    %v36 = vmul.f32 %v26, -0.48860252
    %v37 = vpack.c.bf16 %v36, %v36
    %s38 = scalar_lea.vmem [#allocation5], 1
    %39 = vst [vmem:[%s38] sm:$0x1] %v37
    %v40 = vmul.f32 %v28, 0.48860252
    %v41 = vpack.c.bf16 %v40, %v40
    %s42 = scalar_lea.vmem [#allocation5], 2
    %43 = vst [vmem:[%s42] sm:$0x1] %v41
    %v44 = vmul.f32 %v24, -0.48860252
    %v45 = vpack.c.bf16 %v44, %v44
    %s46 = scalar_lea.vmem [#allocation5], 3
    %47 = vst [vmem:[%s46] sm:$0x1] %v45
    %v48 = vmul.f32 %v29, 1.0925485
    %v49 = vpack.c.bf16 %v48, %v48
    %s50 = scalar_lea.vmem [#allocation5], 4
    %51 = vst [vmem:[%s50] sm:$0x1] %v49
    %v52 = vmul.f32 %v31, -1.0925485
    %v53 = vpack.c.bf16 %v52, %v52
    %s54 = scalar_lea.vmem [#allocation5], 5
    %55 = vst [vmem:[%s54] sm:$0x1] %v53
    %v56 = vmul.f32 %v34, 0.9461747
    %v57 = vsub.f32 %v56, 0.31539157
    %v58 = vpack.c.bf16 %v57, %v57
    %s59 = scalar_lea.vmem [#allocation5], 6
    %60 = vst [vmem:[%s59] sm:$0x1] %v58
    %v61 = vmul.f32 %v30, -1.0925485
    %v62 = vpack.c.bf16 %v61, %v61
    %s63 = scalar_lea.vmem [#allocation5], 7
    %64 = vst [vmem:[%s63] sm:$0x1] %v62
    %v65 = vmul.f32 %v32, 0.54627424
    %v66 = vmul.f32 %v33, 0.54627424
    %v67 = vsub.f32 %v65, %v66
    %v68 = vpack.c.bf16 %v67, %v67
    %s69 = scalar_lea.vmem [#allocation5], 8
    %70 = vst [vmem:[%s69] sm:$0x1] %v68
    %v71 = vmul.f32 %v26, 0.5900436
    %v72 = vmul.f32 %v32, -3.0
    %v73 = vadd.f32 %v72, %v33
    %v74 = vmul.f32 %v71, %v73
    %v75 = vpack.c.bf16 %v74, %v74
    %s76 = scalar_lea.vmem [#allocation5], 9
    %77 = vst [vmem:[%s76] sm:$0x1] %v75
    %v78 = vmul.f32 %v29, 2.8906114
    %v79 = vmul.f32 %v78, %v28
    %v80 = vpack.c.bf16 %v79, %v79
    %s81 = scalar_lea.vmem [#allocation5], 10
    %82 = vst [vmem:[%s81] sm:$0x1] %v80
    %v83 = vmul.f32 %v26, 0.4570458
    %v84 = vmul.f32 %v34, 5.0
    %v85 = vsub.f32 1.0, %v84
    %v86 = vmul.f32 %v83, %v85
    %v87 = vpack.c.bf16 %v86, %v86
    %s88 = scalar_lea.vmem [#allocation5], 11
    %89 = vst [vmem:[%s88] sm:$0x1] %v87
    %v90 = vmul.f32 %v28, 0.37317634
    %v91 = vsub.f32 %v84, 3.0
    %v92 = vmul.f32 %v90, %v91
    %v93 = vpack.c.bf16 %v92, %v92
    %s94 = scalar_lea.vmem [#allocation5], 12
    %95 = vst [vmem:[%s94] sm:$0x1] %v93
    %v96 = vmul.f32 %v24, 0.4570458
    %v97 = vmul.f32 %v96, %v85
    %v98 = vpack.c.bf16 %v97, %v97
    %s99 = scalar_lea.vmem [#allocation5], 13
    %100 = vst [vmem:[%s99] sm:$0x1] %v98
    %v101 = vmul.f32 %v28, 1.4453057
    %v102 = vsub.f32 %v32, %v33
    %v103 = vmul.f32 %v101, %v102
    %v104 = vpack.c.bf16 %v103, %v103
    %s105 = scalar_lea.vmem [#allocation5], 14
    %106 = vst [vmem:[%s105] sm:$0x1] %v104
    %v107 = vmul.f32 %v24, 0.5900436
    %v108 = vsub.f32 0.0, %v32
    %v109 = vmul.f32 %v33, 3.0
    %v110 = vadd.f32 %v108, %v109
    %v111 = vmul.f32 %v107, %v110
    %v112 = vpack.c.bf16 %v111, %v111
    %s113 = scalar_lea.vmem [#allocation5], 15
    %114 = vst [vmem:[%s113] sm:$0x1] %v112
    // Predicated region
    $region10: #{tpu_custom_call.1} parent=1 // pred_check
      _
    $region11: #{tpu_custom_call.1} parent=1 // pred_check_branch
      %116 = sbr.rel (0) target = $region13
    $region12: #{tpu_custom_call.1} parent=1 // pred_region
      %s118 = ssub.s32 256, 256
      %119 = vsyncadd [#allocation4], %s118
      %s120 = sshll.u32 [#allocation5], 4
      %s121 = int_to_ptr.vmem [resolvable:$true] %s120
      %126 = dma.vmem_to_hbm [thread:$0]  %s121, 256, %s1, [#allocation4], 16, 16, 1
    $region13: #{tpu_custom_call.1} parent=1 // pred_fallthru
      _
    // Predicated region
    $region14: #{tpu_custom_call.1} parent=1 // pred_check
      _
    $region15: #{tpu_custom_call.1} parent=1 // pred_check_branch
      %128 = sbr.rel (0) target = $region17
    $region16: #{tpu_custom_call.1} parent=1 // pred_region
      %129 = dma.done [#allocation4], 256
    $region17: #{tpu_custom_call.1} parent=1 // pred_fallthru
      _
    %130 = vsyncpa [#allocation3], 1
    %131 = vsyncpa [#allocation4], 1

</llo_original>
